<compile_context>
chip_gen: v6e
topology: v6e:2x2x1
jax: 0.10.0
libtpu: 0.0.40
codegen_flags: <defaults>
</compile_context>

<pallas_src>
import math

import jax
import jax.numpy as jnp
from jax.experimental import pallas as pl
from jax.experimental.pallas import tpu as pltpu

_SUBLANE = 8
_LANE = 128
_TARGET_BLOCK_BYTES = 8 * 1024 * 1024   # per input block; x2 for double buffering
_VMEM_LIMIT_BYTES = 32 * 1024 * 1024


def _round_up(a, b):
    return -(-a // b) * b


def _make_single_pass_kernel(hw):
    """HW fits in one block: compute the mean and write it directly."""
    inv_hw = 1.0 / hw

    def kernel(x_ref, o_ref):
        x = x_ref[...].astype(jnp.float32)
        o_ref[...] = (jnp.sum(x, axis=-1, keepdims=True) * inv_hw).astype(o_ref.dtype)

    return kernel


def _make_accum_kernel(hw, hw_block, mask_hw):
    """HW tiled across the grid: accumulate into an f32 VMEM scratch."""
    inv_hw = 1.0 / hw

    def kernel(x_ref, o_ref, acc_ref):
        k = pl.program_id(1)

        @pl.when(k == 0)
        def _init():
            acc_ref[...] = jnp.zeros_like(acc_ref)

        x = x_ref[...].astype(jnp.float32)
        if mask_hw:
            # Ragged last HW tile: zero out columns beyond HW before summing.
            col = k * hw_block + jax.lax.broadcasted_iota(jnp.int32, x.shape, 1)
            x = jnp.where(col < hw, x, 0.0)
        acc_ref[...] += jnp.sum(x, axis=-1, keepdims=True)

        @pl.when(k == pl.num_programs(1) - 1)
        def _finalize():
            o_ref[...] = (acc_ref[...] * inv_hw).astype(o_ref.dtype)

    return kernel


def _choose_tiles(r, hw, itemsize):
    """Pick (block_rows, hw_block) so one lane-padded input block is ~8 MiB."""
    max_elems = max(_SUBLANE * _LANE, _TARGET_BLOCK_BYTES // itemsize)
    hw_padded = _round_up(hw, _LANE)          # VMEM lane padding of the tile
    if hw_padded * _SUBLANE <= max_elems:
        # The whole reduction axis fits in one block with >= 8 rows.
        hw_block = hw
        hw_block_padded = hw_padded
    else:
        # Very large spatial size: tile HW (multiple of 128 lanes) so row
        # tiles are not forced to be tiny.
        rows_guess = 256
        hw_block = max(_LANE, (max_elems // rows_guess) // _LANE * _LANE)
        hw_block_padded = hw_block
    rows_budget = max(_SUBLANE, (max_elems // hw_block_padded) // _SUBLANE * _SUBLANE)

    # Prefer >= 2 row tiles (megacore "parallel" sharding on v7x) whenever
    # each tile can still keep at least 8 rows.
    if r >= 2 * _SUBLANE:
        half_rows = _round_up(-(-r // 2), _SUBLANE)
        rows_budget = min(rows_budget, half_rows)

    block_rows = rows_budget
    if block_rows >= r:
        block_rows = r          # exact dim is always legal
    return block_rows, hw_block


def global_average(x, dims=(-1, -2), keepdims=False):
    """Mean of x over its last two (spatial) dims, matching GlobalAverage."""
    nd = x.ndim
    assert nd >= 2 and tuple(sorted(d % nd for d in dims)) == (nd - 2, nd - 1), \
        "kernel implements reduction over the last two dims"

    lead_shape = x.shape[:-2]
    H, W = x.shape[-2], x.shape[-1]
    R = math.prod(lead_shape) if lead_shape else 1
    HW = H * W
    itemsize = jnp.dtype(x.dtype).itemsize

    block_rows, hw_block = _choose_tiles(R, HW, itemsize)
    num_i = pl.cdiv(R, block_rows)
    num_k = pl.cdiv(HW, hw_block)
    mask_hw = (num_k > 1) and (HW % hw_block != 0)

    if num_k == 1:
        kernel = _make_single_pass_kernel(HW)
        scratch_shapes = []
    else:
        kernel = _make_accum_kernel(HW, hw_block, mask_hw)
        scratch_shapes = [pltpu.VMEM((block_rows, 1), jnp.float32)]

    x2 = x.reshape(R, HW)   # collapses contiguous dims; no data movement

    out = pl.pallas_call(
        kernel,
        out_shape=jax.ShapeDtypeStruct((R, 1), x.dtype),
        grid_spec=pltpu.PrefetchScalarGridSpec(
            num_scalar_prefetch=0,
            grid=(num_i, num_k),  # reduction (HW) axis last
            in_specs=[pl.BlockSpec((block_rows, hw_block), lambda i, k: (i, k))],
            out_specs=pl.BlockSpec((block_rows, 1), lambda i, k: (i, 0)),
            scratch_shapes=scratch_shapes,
        ),
        compiler_params=pltpu.CompilerParams(
            dimension_semantics=("parallel", "arbitrary"),
            vmem_limit_bytes=_VMEM_LIMIT_BYTES,
        ),
        cost_estimate=pl.CostEstimate(
            flops=R * HW,
            transcendentals=0,
            bytes_accessed=R * HW * itemsize + R * itemsize,
        ),
    )(x2)

    out = out[:, 0].reshape(lead_shape)
    if keepdims:
        out = out.reshape(lead_shape + (1, 1))
    return out


if __name__ == "__main__":
    key = jax.random.PRNGKey(0)
    x = jax.random.normal(key, (2, 4, 16, 16), dtype=jnp.float32)

    y = global_average(x, dims=(-1, -2), keepdims=False)
    y = jax.block_until_ready(y)

    # Reference check against plain JAX mean.
    y_ref = jnp.mean(x, axis=(-1, -2))
    assert y.shape == (2, 4), y.shape
    assert jnp.allclose(y, y_ref, atol=1e-5, rtol=1e-5)

    # Non-aligned spatial dims + keepdims sanity check.
    x2 = jax.random.normal(jax.random.PRNGKey(0), (2, 3, 7, 5), dtype=jnp.float32)
    y2 = jax.block_until_ready(global_average(x2, dims=(-1, -2), keepdims=True))
    assert y2.shape == (2, 3, 1, 1), y2.shape
    assert jnp.allclose(y2, jnp.mean(x2, axis=(-1, -2), keepdims=True),
                        atol=1e-5, rtol=1e-5)

    print("KERNEL_OK")
</pallas_src>

<mosaic_0001>
module attributes {stable_mosaic.version = 11 : i64} {
  func.func @kernel(%arg0: i32, %arg1: i32, %arg2: memref<8x256xf32, #tpu.memory_space<vmem>>, %arg3: memref<8x1xf32, #tpu.memory_space<vmem>>) attributes {dimension_semantics = [#tpu.dimension_semantics<parallel>, #tpu.dimension_semantics<arbitrary>], iteration_bounds = array<i64: 1, 1>, scalar_prefetch = 0 : i64, scratch_operands = 0 : i64, tpu.core_type = #tpu.core_type<tc>, window_params = [{transform_indices = @transform_0, window_bounds = array<i64: 8, 256>}, {transform_indices = @transform_1, window_bounds = array<i64: 8, 1>}]} {
    %c0 = arith.constant 0 : index
    %c0_0 = arith.constant 0 : index
    %0 = vector.load %arg2[%c0, %c0_0] : memref<8x256xf32, #tpu.memory_space<vmem>>, vector<8x256xf32>
    %cst = arith.constant dense<0.000000e+00> : vector<8xf32>
    %1 = vector.multi_reduction <add>, %0, %cst [1] : vector<8x256xf32> to vector<8xf32>
    %2 = vector.shape_cast %1 : vector<8xf32> to vector<8x1xf32>
    %cst_1 = arith.constant 3.906250e-03 : f32
    %3 = vector.broadcast %cst_1 : f32 to vector<8x1xf32>
    %4 = arith.mulf %2, %3 : vector<8x1xf32>
    %c0_2 = arith.constant 0 : index
    %c0_3 = arith.constant 0 : index
    %5 = vector.load %arg3[%c0_2, %c0_3] : memref<8x1xf32, #tpu.memory_space<vmem>>, vector<8x1xf32>
    tpu.vector_store %arg3[%c0_2, %c0_3], %4 {strides = array<i32>} : memref<8x1xf32, #tpu.memory_space<vmem>>, vector<8x1xf32>,
    return
  }
  func.func @transform_0(%arg0: i32, %arg1: i32) -> (i32, i32) {
    %c0_i32 = arith.constant 0 : i32
    return %arg0, %arg1 : i32, i32
  }
  func.func @transform_1(%arg0: i32, %arg1: i32) -> (i32, i32) {
    %c0_i32 = arith.constant 0 : i32
    %c0_i32_0 = arith.constant 0 : i32
    return %arg0, %c0_i32 : i32, i32
  }
}

</mosaic_0001>

<llo_original>
// kernel: tpu_custom_call.1
$region0: #{tpu_custom_call.1}
  #allocation0 [shape = 'u32[]', space=smem, size = 0x4, offset = 0x4, fixed_abs, tag = 'smem constant byte address 0x4 - core index']
  #allocation1 [shape = 'u32[144,128]{1,0:T(1,128)}', space=vmem, size = 0x12000, scoped, tag = 'internal scratch']
  %s0 = inlined_call_operand.hbm [shape: f32[8,256], index: 0, kind: input, shape index: {}]
  %s1 = inlined_call_operand.vmem [shape: f32[8,1], index: 1, kind: output, shape index: {}]
  %s2 = sld [smem:[#allocation0]]
  $region18: #{tpu_custom_call.1} parent=0
    _
  %s4 = ssub.s32 1, %s2
  %s5 = scalar_select 0, %s4, %s2
  $region1: #{tpu_custom_call.1} parent=0
    #allocation2 [shape = 'u8[8192]{0}', space=vmem, size = 0x2000, scoped, tag = 'input window, operand 0, single buffered']
    #allocation3 [shape = 's32[1]{0}', space=sflag, size = 0x4, scoped, tag = 'scoped memory for tpu_custom_call.1']
    %6 = vsyncpa [#allocation3], 0
    // Predicated region
    $region2: #{tpu_custom_call.1} parent=1 // pred_check
      _
    $region3: #{tpu_custom_call.1} parent=1 // pred_check_branch
      %8 = sbr.rel (0) target = $region5
    $region4: #{tpu_custom_call.1} parent=1 // pred_region
      %s10 = ssub.s32 256, 256
      %11 = vsyncadd [#allocation3], %s10
      %s13 = sshll.u32 [#allocation2], 4
      %s14 = int_to_ptr.vmem [resolvable:$true] %s13
      %16 = dma.hbm_to_vmem [thread:$0]  %s0, 256, %s14, [#allocation3]
    $region5: #{tpu_custom_call.1} parent=1 // pred_fallthru
      _
    // Predicated region
    $region6: #{tpu_custom_call.1} parent=1 // pred_check
      _
    $region7: #{tpu_custom_call.1} parent=1 // pred_check_branch
      %18 = sbr.rel (0) target = $region9
    $region8: #{tpu_custom_call.1} parent=1 // pred_region
      %19 = dma.done [#allocation3], 256
    $region9: #{tpu_custom_call.1} parent=1 // pred_fallthru
      _
    %v20 = vld [vmem:[#allocation2] sm:$0xff]
    %v21 = vld [vmem:[#allocation2 + $0x8] sm:$0xff]
    %v22 = vadd.f32 %v20, %v21
    %23 = vadd.xlane.f32.xlu0 %v22
    %v24 = vpop.xlane.xlu0 %23
    %v25 = vmul.f32 %v24, 0.00390625
    %vm26 = vcmask 7168
    %27 = vst.msk [vmem:[%s1] sm:$0xff] %vm26, %v25
    // Predicated region
    $region10: #{tpu_custom_call.1} parent=1 // pred_check
      _
    $region11: #{tpu_custom_call.1} parent=1 // pred_check_branch
      %29 = sbr.rel (0) target = $region13
    $region12: #{tpu_custom_call.1} parent=1 // pred_region
      _
    $region13: #{tpu_custom_call.1} parent=1 // pred_fallthru
      _
    // Predicated region
    $region14: #{tpu_custom_call.1} parent=1 // pred_check
      _
    $region15: #{tpu_custom_call.1} parent=1 // pred_check_branch
      %31 = sbr.rel (0) target = $region17
    $region16: #{tpu_custom_call.1} parent=1 // pred_region
      _
    $region17: #{tpu_custom_call.1} parent=1 // pred_fallthru
      _
    %32 = vsyncpa [#allocation3], 1

</llo_original>
